<compile_context>
chip_gen: v7x
topology: tpu7x:2x2x1
jax: 0.10.0
libtpu: 0.0.40
codegen_flags: <defaults>
</compile_context>

<pallas_src>
import jax
import jax.numpy as jnp
from jax import lax
from jax.experimental import pallas as pl
from jax.experimental.pallas import tpu as pltpu

EPS = 1e-5
LANE = 128


def _round_up(x, m):
    return (x + m - 1) // m * m


def _make_kernel(n_emb, batch, tile_b, sum_cat_pad, n_num_pad):
    """Assemble packed x tile via one-hot MXU gather + accumulate BN stats."""

    def kernel(idx_ref, num_ref, w_ref, gamma_ref, beta_ref,
               x_ref, a_ref, b_ref, sum_sc, sq_sc):
        i = pl.program_id(0)

        @pl.when(i == 0)
        def _():
            sum_sc[...] = jnp.zeros_like(sum_sc)
            sq_sc[...] = jnp.zeros_like(sq_sc)

        # One-hot MXU gather: each embedding column contributes a single 1 per
        # row at its globally-offset category index; W maps those rows to the
        # packed (already concatenated) output columns, so one matmul yields
        # every embedding segment in place.  One-hot x value is exact.
        lanes = lax.broadcasted_iota(jnp.int32, (tile_b, sum_cat_pad), 1)
        onehot = (lanes == idx_ref[:, 0:1]).astype(jnp.float32)
        for e in range(1, n_emb):
            onehot += (lanes == idx_ref[:, e:e + 1]).astype(jnp.float32)

        x_ref[...] = jnp.dot(onehot, w_ref[...],
                             preferred_element_type=jnp.float32)

        # Numeric segment lives in columns [0, n_num); the matmul left those
        # columns zero.  num_ref is zero-padded to n_num_pad (128-aligned), so
        # this add is lane-dense and cannot disturb embedding columns.
        x_ref[:, 0:n_num_pad] = x_ref[:, 0:n_num_pad] + num_ref[...]

        # Batch statistics; mask out padded batch rows.
        x = x_ref[...]
        rows = i * tile_b + lax.broadcasted_iota(jnp.int32, (tile_b, 1), 0)
        valid = (rows < batch).astype(jnp.float32)
        xm = x * valid
        sum_sc[...] += jnp.sum(xm, axis=0, keepdims=True)
        sq_sc[...] += jnp.sum(xm * xm, axis=0, keepdims=True)

        # Finalize: fold BatchNorm into a single per-feature FMA (a, b).
        @pl.when(i == pl.num_programs(0) - 1)
        def _():
            inv_n = 1.0 / batch
            mean = sum_sc[...] * inv_n
            var = jnp.maximum(sq_sc[...] * inv_n - mean * mean, 0.0)
            a = gamma_ref[...] * lax.rsqrt(var + EPS)
            a_ref[...] = a
            b_ref[...] = beta_ref[...] - mean * a

    return kernel


def dense_feature_layer(numeric, idx_list, tables, gamma, beta, *, tile_b=None):
    """numeric: [B, n_numeric] f32; idx_list: list of [B] int; tables: list of
    [ncat_e, emb_dim] f32; gamma/beta: [F], F = n_numeric + n_emb*emb_dim.
    Returns BatchNorm1d(concat([numeric] + gathered embeddings), dim=1)."""
    B, n_num = numeric.shape
    n_emb = len(tables)
    emb_dim = tables[0].shape[1]
    F = n_num + n_emb * emb_dim

    f_pad = _round_up(F, LANE)
    n_num_pad = _round_up(max(n_num, 1), LANE)

    cat_sizes = [int(t.shape[0]) for t in tables]
    cat_offs = [0]
    for nc in cat_sizes[:-1]:
        cat_offs.append(cat_offs[-1] + nc)
    sum_cat = sum(cat_sizes)
    sum_cat_pad = _round_up(sum_cat, LANE)

    if tile_b is None:
        tile_b = min(512, _round_up(B, 8))
    tile_b = _round_up(tile_b, 8)
    b_pad = _round_up(B, tile_b)
    n_tiles = b_pad // tile_b

    f32 = jnp.float32

    numeric_p = jnp.zeros((b_pad, n_num_pad), f32).at[:B, :n_num].set(
        numeric.astype(f32))

    # Per-row global category indices (clamped; PyTorch would raise on OOB).
    idx_glob = jnp.zeros((b_pad, n_emb), jnp.int32)
    for e, (ix, nc, off) in enumerate(zip(idx_list, cat_sizes, cat_offs)):
        idx_glob = idx_glob.at[:B, e].set(
            off + jnp.clip(ix.astype(jnp.int32), 0, nc - 1))

    # Packed gather matrix: table_e rows at [off_e, off_e+ncat_e), columns at
    # the packed concat position [n_num + e*emb_dim, n_num + (e+1)*emb_dim).
    w = jnp.zeros((sum_cat_pad, f_pad), f32)
    for e, (t, off) in enumerate(zip(tables, cat_offs)):
        col = n_num + e * emb_dim
        w = w.at[off:off + t.shape[0], col:col + emb_dim].set(t.astype(f32))

    # gamma/beta in packed order; padded lanes get gamma=1, beta=0 (inert).
    gamma_p = jnp.ones((1, f_pad), f32).at[0, :F].set(gamma.astype(f32))
    beta_p = jnp.zeros((1, f_pad), f32).at[0, :F].set(beta.astype(f32))

    kernel = _make_kernel(n_emb, B, tile_b, sum_cat_pad, n_num_pad)

    x_slab, coef_a, coef_b = pl.pallas_call(
        kernel,
        out_shape=(
            jax.ShapeDtypeStruct((b_pad, f_pad), f32),
            jax.ShapeDtypeStruct((1, f_pad), f32),
            jax.ShapeDtypeStruct((1, f_pad), f32),
        ),
        grid=(n_tiles,),
        in_specs=[
            pl.BlockSpec((tile_b, n_emb), lambda i: (i, 0)),       # indices
            pl.BlockSpec((tile_b, n_num_pad), lambda i: (i, 0)),   # numeric
            pl.BlockSpec((sum_cat_pad, f_pad), lambda i: (0, 0)),  # W (resident)
            pl.BlockSpec((1, f_pad), lambda i: (0, 0)),            # gamma
            pl.BlockSpec((1, f_pad), lambda i: (0, 0)),            # beta
        ],
        out_specs=(
            pl.BlockSpec((tile_b, f_pad), lambda i: (i, 0)),       # x slab
            pl.BlockSpec((1, f_pad), lambda i: (0, 0)),            # a
            pl.BlockSpec((1, f_pad), lambda i: (0, 0)),            # b
        ),
        scratch_shapes=[
            pltpu.VMEM((1, f_pad), f32),   # running sum
            pltpu.VMEM((1, f_pad), f32),   # running sum of squares
        ],
        compiler_params=pltpu.CompilerParams(
            dimension_semantics=("arbitrary",),  # stats accumulate sequentially
        ),
    )(idx_glob, numeric_p, w, gamma_p, beta_p)

    # Fused un-pad + BatchNorm FMA in the wrapper: XLA fuses the FMA into the
    # slice copy.  Packed layout == PyTorch concat order, so no reordering.
    return x_slab[:B, :F] * coef_a[0, :F] + coef_b[0, :F]


def reference(numeric, idx_list, tables, gamma, beta):
    parts = [numeric.astype(jnp.float32)]
    for ix, t in zip(idx_list, tables):
        parts.append(jnp.take(t, ix.astype(jnp.int32), axis=0).astype(jnp.float32))
    x = jnp.concatenate(parts, axis=1)
    mean = jnp.mean(x, axis=0, keepdims=True)
    var = jnp.mean((x - mean) ** 2, axis=0, keepdims=True)
    return (x - mean) * lax.rsqrt(var + EPS) * gamma + beta


if __name__ == "__main__":
    # Synthetic config: 4 numeric columns, 2 embedding columns, emb_dim=4.
    B = 8
    n_numeric = 4
    emb_dim = 4
    nrof_cat = [16, 12]
    F = n_numeric + len(nrof_cat) * emb_dim

    key = jax.random.PRNGKey(0)
    keys = jax.random.split(key, 7)
    numeric = jax.random.normal(keys[0], (B, n_numeric), dtype=jnp.float32)
    idx_list = [jax.random.randint(keys[1 + e], (B,), 0, nc, dtype=jnp.int32)
                for e, nc in enumerate(nrof_cat)]
    tables = [jax.random.normal(keys[3 + e], (nc, emb_dim), dtype=jnp.float32)
              for e, nc in enumerate(nrof_cat)]
    gamma = jnp.ones((F,), jnp.float32)
    beta = jnp.zeros((F,), jnp.float32)

    out = dense_feature_layer(numeric, idx_list, tables, gamma, beta)
    out = jax.block_until_ready(out)
    ref = reference(numeric, idx_list, tables, gamma, beta)
    assert out.shape == (B, F)
    assert jnp.allclose(out, ref, atol=1e-3, rtol=1e-3), \
        float(jnp.max(jnp.abs(out - ref)))

    # Second config: B not a multiple of the batch tile, multi-tile grid
    # (exercises batch-row masking and cross-tile stats accumulation).
    B2 = 13
    numeric2 = jax.random.normal(keys[6], (B2, n_numeric), dtype=jnp.float32)
    idx_list2 = [jax.random.randint(keys[1 + e], (B2,), 0, nc, dtype=jnp.int32)
                 for e, nc in enumerate(nrof_cat)]
    out2 = dense_feature_layer(numeric2, idx_list2, tables, gamma, beta, tile_b=8)
    out2 = jax.block_until_ready(out2)
    ref2 = reference(numeric2, idx_list2, tables, gamma, beta)
    assert out2.shape == (B2, F)
    assert jnp.allclose(out2, ref2, atol=1e-3, rtol=1e-3), \
        float(jnp.max(jnp.abs(out2 - ref2)))

    print("KERNEL_OK")
</pallas_src>

<mosaic_0001>
module attributes {stable_mosaic.version = 11 : i64} {
  func.func @kernel(%arg0: i32, %arg1: memref<8x2xi32, #tpu.memory_space<vmem>>, %arg2: memref<8x128xf32, #tpu.memory_space<vmem>>, %arg3: memref<128x128xf32, #tpu.memory_space<vmem>>, %arg4: memref<1x128xf32, #tpu.memory_space<vmem>>, %arg5: memref<1x128xf32, #tpu.memory_space<vmem>>, %arg6: memref<8x128xf32, #tpu.memory_space<vmem>>, %arg7: memref<1x128xf32, #tpu.memory_space<vmem>>, %arg8: memref<1x128xf32, #tpu.memory_space<vmem>>, %arg9: memref<1x128xf32, #tpu.memory_space<vmem>>, %arg10: memref<1x128xf32, #tpu.memory_space<vmem>>) attributes {dimension_semantics = [#tpu.dimension_semantics<arbitrary>], iteration_bounds = array<i64: 1>, scalar_prefetch = 0 : i64, scratch_operands = 2 : i64, tpu.core_type = #tpu.core_type<tc>, window_params = [{transform_indices = @transform_0, window_bounds = array<i64: 8, 2>}, {transform_indices = @transform_1, window_bounds = array<i64: 8, 128>}, {pipeline_mode = #tpu.pipeline_mode<synchronous>, transform_indices = @transform_2, window_bounds = array<i64: 128, 128>}, {pipeline_mode = #tpu.pipeline_mode<synchronous>, transform_indices = @transform_3, window_bounds = array<i64: 1, 128>}, {pipeline_mode = #tpu.pipeline_mode<synchronous>, transform_indices = @transform_4, window_bounds = array<i64: 1, 128>}, {transform_indices = @transform_5, window_bounds = array<i64: 8, 128>}, {pipeline_mode = #tpu.pipeline_mode<synchronous>, transform_indices = @transform_6, window_bounds = array<i64: 1, 128>}, {pipeline_mode = #tpu.pipeline_mode<synchronous>, transform_indices = @transform_7, window_bounds = array<i64: 1, 128>}]} {
    %c0_i32 = arith.constant 0 : i32
    %0 = arith.cmpi eq, %arg0, %c0_i32 : i32
    %1 = arith.extui %0 : i1 to i32
    %c0_i32_0 = arith.constant 0 : i32
    %2 = arith.cmpi ne, %1, %c0_i32_0 : i32
    scf.if %2 {
      %cst_28 = arith.constant 0.000000e+00 : f32
      %47 = vector.broadcast %cst_28 : f32 to vector<1x128xf32>
      %c0_29 = arith.constant 0 : index
      %c0_30 = arith.constant 0 : index
      %48 = vector.load %arg9[%c0_29, %c0_30] : memref<1x128xf32, #tpu.memory_space<vmem>>, vector<1x128xf32>
      tpu.vector_store %arg9[%c0_29, %c0_30], %47 {strides = array<i32>} : memref<1x128xf32, #tpu.memory_space<vmem>>, vector<1x128xf32>,
      %cst_31 = arith.constant 0.000000e+00 : f32
      %49 = vector.broadcast %cst_31 : f32 to vector<1x128xf32>
      %c0_32 = arith.constant 0 : index
      %c0_33 = arith.constant 0 : index
      %50 = vector.load %arg10[%c0_32, %c0_33] : memref<1x128xf32, #tpu.memory_space<vmem>>, vector<1x128xf32>
      tpu.vector_store %arg10[%c0_32, %c0_33], %49 {strides = array<i32>} : memref<1x128xf32, #tpu.memory_space<vmem>>, vector<1x128xf32>,
    } else {
    }
    %3 = tpu.iota {dimensions = array<i32: 1>} : vector<8x128xi32>
    %c0 = arith.constant 0 : index
    %c0_1 = arith.constant 0 : index
    %4 = vector.load %arg1[%c0, %c0_1] : memref<8x2xi32, #tpu.memory_space<vmem>>, vector<8x1xi32>
    %5 = vector.broadcast %4 : vector<8x1xi32> to vector<8x128xi32>
    %6 = arith.cmpi eq, %3, %5 : vector<8x128xi32>
    %7 = arith.extui %6 : vector<8x128xi1> to vector<8x128xi32>
    %8 = arith.sitofp %7 : vector<8x128xi32> to vector<8x128xf32>
    %c0_2 = arith.constant 0 : index
    %c1 = arith.constant 1 : index
    %9 = vector.load %arg1[%c0_2, %c1] : memref<8x2xi32, #tpu.memory_space<vmem>>, vector<8x1xi32>
    %10 = vector.broadcast %9 : vector<8x1xi32> to vector<8x128xi32>
    %11 = arith.cmpi eq, %3, %10 : vector<8x128xi32>
    %12 = arith.extui %11 : vector<8x128xi1> to vector<8x128xi32>
    %13 = arith.sitofp %12 : vector<8x128xi32> to vector<8x128xf32>
    %14 = arith.addf %8, %13 : vector<8x128xf32>
    %c0_3 = arith.constant 0 : index
    %c0_4 = arith.constant 0 : index
    %15 = vector.load %arg3[%c0_3, %c0_4] : memref<128x128xf32, #tpu.memory_space<vmem>>, vector<128x128xf32>
    %cst = arith.constant dense<0.000000e+00> : vector<8x128xf32>
    %16 = tpu.matmul %14, %15, %cst {dimension_numbers = #tpu.dot_dimension_numbers<[1], [0], [0], [1], [0, 0, 1, 1], [], []>} : vector<8x128xf32>, vector<128x128xf32>, vector<8x128xf32> -> vector<8x128xf32>
    %c0_5 = arith.constant 0 : index
    %c0_6 = arith.constant 0 : index
    %17 = vector.load %arg6[%c0_5, %c0_6] : memref<8x128xf32, #tpu.memory_space<vmem>>, vector<8x128xf32>
    tpu.vector_store %arg6[%c0_5, %c0_6], %16 {strides = array<i32>} : memref<8x128xf32, #tpu.memory_space<vmem>>, vector<8x128xf32>,
    %c0_7 = arith.constant 0 : index
    %c0_8 = arith.constant 0 : index
    %18 = vector.load %arg6[%c0_7, %c0_8] : memref<8x128xf32, #tpu.memory_space<vmem>>, vector<8x128xf32>
    %c0_9 = arith.constant 0 : index
    %c0_10 = arith.constant 0 : index
    %19 = vector.load %arg2[%c0_9, %c0_10] : memref<8x128xf32, #tpu.memory_space<vmem>>, vector<8x128xf32>
    %20 = arith.addf %18, %19 : vector<8x128xf32>
    %c0_11 = arith.constant 0 : index
    %c0_12 = arith.constant 0 : index
    %21 = vector.load %arg6[%c0_11, %c0_12] : memref<8x128xf32, #tpu.memory_space<vmem>>, vector<8x128xf32>
    tpu.vector_store %arg6[%c0_11, %c0_12], %20 {strides = array<i32>} : memref<8x128xf32, #tpu.memory_space<vmem>>, vector<8x128xf32>,
    %c0_13 = arith.constant 0 : index
    %c0_14 = arith.constant 0 : index
    %22 = vector.load %arg6[%c0_13, %c0_14] : memref<8x128xf32, #tpu.memory_space<vmem>>, vector<8x128xf32>
    %c8_i32 = arith.constant 8 : i32
    %23 = arith.muli %arg0, %c8_i32 : i32
    %24 = tpu.iota {dimensions = array<i32: 0>} : vector<8x1xi32>
    %25 = vector.broadcast %23 : i32 to vector<8x1xi32>
    %26 = arith.addi %25, %24 : vector<8x1xi32>
    %c8_i32_15 = arith.constant 8 : i32
    %27 = vector.broadcast %c8_i32_15 : i32 to vector<8x1xi32>
    %28 = arith.cmpi slt, %26, %27 : vector<8x1xi32>
    %29 = arith.extui %28 : vector<8x1xi1> to vector<8x1xi32>
    %30 = arith.sitofp %29 : vector<8x1xi32> to vector<8x1xf32>
    %31 = vector.broadcast %30 : vector<8x1xf32> to vector<8x128xf32>
    %32 = arith.mulf %22, %31 : vector<8x128xf32>
    %c0_16 = arith.constant 0 : index
    %c0_17 = arith.constant 0 : index
    %33 = vector.load %arg9[%c0_16, %c0_17] : memref<1x128xf32, #tpu.memory_space<vmem>>, vector<1x128xf32>
    %cst_18 = arith.constant dense<0.000000e+00> : vector<128xf32>
    %34 = vector.multi_reduction <add>, %32, %cst_18 [0] : vector<8x128xf32> to vector<128xf32>
    %35 = vector.shape_cast %34 : vector<128xf32> to vector<1x128xf32>
    %36 = arith.addf %33, %35 : vector<1x128xf32>
    %c0_19 = arith.constant 0 : index
    %c0_20 = arith.constant 0 : index
    %37 = vector.load %arg9[%c0_19, %c0_20] : memref<1x128xf32, #tpu.memory_space<vmem>>, vector<1x128xf32>
    tpu.vector_store %arg9[%c0_19, %c0_20], %36 {strides = array<i32>} : memref<1x128xf32, #tpu.memory_space<vmem>>, vector<1x128xf32>,
    %c0_21 = arith.constant 0 : index
    %c0_22 = arith.constant 0 : index
    %38 = vector.load %arg10[%c0_21, %c0_22] : memref<1x128xf32, #tpu.memory_space<vmem>>, vector<1x128xf32>
    %39 = arith.mulf %32, %32 : vector<8x128xf32>
    %cst_23 = arith.constant dense<0.000000e+00> : vector<128xf32>
    %40 = vector.multi_reduction <add>, %39, %cst_23 [0] : vector<8x128xf32> to vector<128xf32>
    %41 = vector.shape_cast %40 : vector<128xf32> to vector<1x128xf32>
    %42 = arith.addf %38, %41 : vector<1x128xf32>
    %c0_24 = arith.constant 0 : index
    %c0_25 = arith.constant 0 : index
    %43 = vector.load %arg10[%c0_24, %c0_25] : memref<1x128xf32, #tpu.memory_space<vmem>>, vector<1x128xf32>
    tpu.vector_store %arg10[%c0_24, %c0_25], %42 {strides = array<i32>} : memref<1x128xf32, #tpu.memory_space<vmem>>, vector<1x128xf32>,
    %c0_i32_26 = arith.constant 0 : i32
    %44 = arith.cmpi eq, %arg0, %c0_i32_26 : i32
    %45 = arith.extui %44 : i1 to i32
    %c0_i32_27 = arith.constant 0 : i32
    %46 = arith.cmpi ne, %45, %c0_i32_27 : i32
    scf.if %46 {
      %c0_28 = arith.constant 0 : index
      %c0_29 = arith.constant 0 : index
      %47 = vector.load %arg9[%c0_28, %c0_29] : memref<1x128xf32, #tpu.memory_space<vmem>>, vector<1x128xf32>
      %cst_30 = arith.constant 1.250000e-01 : f32
      %48 = vector.broadcast %cst_30 : f32 to vector<1x128xf32>
      %49 = arith.mulf %47, %48 : vector<1x128xf32>
      %c0_31 = arith.constant 0 : index
      %c0_32 = arith.constant 0 : index
      %50 = vector.load %arg10[%c0_31, %c0_32] : memref<1x128xf32, #tpu.memory_space<vmem>>, vector<1x128xf32>
      %cst_33 = arith.constant 1.250000e-01 : f32
      %51 = vector.broadcast %cst_33 : f32 to vector<1x128xf32>
      %52 = arith.mulf %50, %51 : vector<1x128xf32>
      %53 = arith.mulf %49, %49 : vector<1x128xf32>
      %54 = arith.subf %52, %53 : vector<1x128xf32>
      %cst_34 = arith.constant 0.000000e+00 : f32
      %55 = vector.broadcast %cst_34 : f32 to vector<1x128xf32>
      %56 = arith.maximumf %54, %55 : vector<1x128xf32>
      %c0_35 = arith.constant 0 : index
      %c0_36 = arith.constant 0 : index
      %57 = vector.load %arg4[%c0_35, %c0_36] : memref<1x128xf32, #tpu.memory_space<vmem>>, vector<1x128xf32>
      %cst_37 = arith.constant 9.99999974E-6 : f32
      %58 = vector.broadcast %cst_37 : f32 to vector<1x128xf32>
      %59 = arith.addf %56, %58 : vector<1x128xf32>
      %60 = math.rsqrt %59 : vector<1x128xf32>
      %61 = arith.mulf %57, %60 : vector<1x128xf32>
      %c0_38 = arith.constant 0 : index
      %c0_39 = arith.constant 0 : index
      %62 = vector.load %arg7[%c0_38, %c0_39] : memref<1x128xf32, #tpu.memory_space<vmem>>, vector<1x128xf32>
      tpu.vector_store %arg7[%c0_38, %c0_39], %61 {strides = array<i32>} : memref<1x128xf32, #tpu.memory_space<vmem>>, vector<1x128xf32>,
      %c0_40 = arith.constant 0 : index
      %c0_41 = arith.constant 0 : index
      %63 = vector.load %arg5[%c0_40, %c0_41] : memref<1x128xf32, #tpu.memory_space<vmem>>, vector<1x128xf32>
      %64 = arith.mulf %49, %61 : vector<1x128xf32>
      %65 = arith.subf %63, %64 : vector<1x128xf32>
      %c0_42 = arith.constant 0 : index
      %c0_43 = arith.constant 0 : index
      %66 = vector.load %arg8[%c0_42, %c0_43] : memref<1x128xf32, #tpu.memory_space<vmem>>, vector<1x128xf32>
      tpu.vector_store %arg8[%c0_42, %c0_43], %65 {strides = array<i32>} : memref<1x128xf32, #tpu.memory_space<vmem>>, vector<1x128xf32>,
    } else {
    }
    return
  }
  func.func @transform_0(%arg0: i32) -> (i32, i32) {
    %c0_i32 = arith.constant 0 : i32
    %c0_i32_0 = arith.constant 0 : i32
    return %arg0, %c0_i32 : i32, i32
  }
  func.func @transform_1(%arg0: i32) -> (i32, i32) {
    %c0_i32 = arith.constant 0 : i32
    %c0_i32_0 = arith.constant 0 : i32
    return %arg0, %c0_i32 : i32, i32
  }
  func.func @transform_2(%arg0: i32) -> (i32, i32) {
    %c0_i32 = arith.constant 0 : i32
    %c0_i32_0 = arith.constant 0 : i32
    %c0_i32_1 = arith.constant 0 : i32
    return %c0_i32, %c0_i32_0 : i32, i32
  }
  func.func @transform_3(%arg0: i32) -> (i32, i32) {
    %c0_i32 = arith.constant 0 : i32
    %c0_i32_0 = arith.constant 0 : i32
    %c0_i32_1 = arith.constant 0 : i32
    return %c0_i32, %c0_i32_0 : i32, i32
  }
  func.func @transform_4(%arg0: i32) -> (i32, i32) {
    %c0_i32 = arith.constant 0 : i32
    %c0_i32_0 = arith.constant 0 : i32
    %c0_i32_1 = arith.constant 0 : i32
    return %c0_i32, %c0_i32_0 : i32, i32
  }
  func.func @transform_5(%arg0: i32) -> (i32, i32) {
    %c0_i32 = arith.constant 0 : i32
    %c0_i32_0 = arith.constant 0 : i32
    return %arg0, %c0_i32 : i32, i32
  }
  func.func @transform_6(%arg0: i32) -> (i32, i32) {
    %c0_i32 = arith.constant 0 : i32
    %c0_i32_0 = arith.constant 0 : i32
    %c0_i32_1 = arith.constant 0 : i32
    return %c0_i32, %c0_i32_0 : i32, i32
  }
  func.func @transform_7(%arg0: i32) -> (i32, i32) {
    %c0_i32 = arith.constant 0 : i32
    %c0_i32_0 = arith.constant 0 : i32
    %c0_i32_1 = arith.constant 0 : i32
    return %c0_i32, %c0_i32_0 : i32, i32
  }
}

</mosaic_0001>

<llo_original>
// kernel: tpu_custom_call.1
$region0: #{tpu_custom_call.1}
  #allocation0 [shape = 'u32[]', space=smem, size = 0x4, offset = 0x4, fixed_abs, tag = 'smem constant byte address 0x4 - core index']
  #allocation1 [shape = 'u32[144,128]{1,0:T(1,128)}', space=vmem, size = 0x12000, scoped, tag = 'internal scratch']
  #allocation2 [shape = 'f32[1,128]{1,0:T(1,128)}', space=vmem, size = 0x200, scoped, tag = 'scratch operand']
  #allocation3 [shape = 'f32[1,128]{1,0:T(1,128)}', space=vmem, size = 0x200, scoped, tag = 'scratch operand']
  %s0 = inlined_call_operand.vmem [shape: s32[8,2], index: 0, kind: input, shape index: {}]
  %s1 = inlined_call_operand.vmem [shape: f32[8,128], index: 1, kind: input, shape index: {}]
  %s2 = inlined_call_operand.hbm [shape: f32[128,128], index: 2, kind: input, shape index: {}]
  %s3 = inlined_call_operand.vmem [shape: f32[1,128], index: 3, kind: input, shape index: {}]
  %s4 = inlined_call_operand.vmem [shape: f32[1,128], index: 4, kind: input, shape index: {}]
  %s5 = inlined_call_operand.hbm [shape: f32[8,128], index: 5, kind: output, shape index: {0}]
  %s6 = inlined_call_operand.hbm [shape: f32[1,128], index: 6, kind: output, shape index: {1}]
  %s7 = inlined_call_operand.hbm [shape: f32[1,128], index: 7, kind: output, shape index: {2}]
  %8 = xla_tuple %s5, %s6, %s7
  %s9 = sld [smem:[#allocation0]]
  $region58: #{tpu_custom_call.1} parent=0
    _
  %s11 = ssub.s32 1, %s9
  %s12 = scalar_select 0, %s11, %s9
  $region1: #{tpu_custom_call.1} parent=0
    #allocation4 [shape = 'u8[65536]{0}', space=vmem, size = 0x10000, scoped, tag = 'input window, operand 2, single buffered']
    #allocation5 [shape = 's32[1]{0}', space=sflag, size = 0x4, scoped, tag = 'scoped memory for tpu_custom_call.1']
    #allocation6 [shape = 's32[1]{0}', space=sflag, size = 0x4, scoped, tag = 'scoped memory for tpu_custom_call.1']
    #allocation7 [shape = 'u8[4096]{0}', space=vmem, size = 0x1000, scoped, tag = 'output window, operand 0, single buffered']
    #allocation8 [shape = 'u8[512]{0}', space=vmem, size = 0x400, scoped, tag = 'output window, operand 1, single buffered']
    #allocation9 [shape = 's32[1]{0}', space=sflag, size = 0x4, scoped, tag = 'scoped memory for tpu_custom_call.1']
    #allocation10 [shape = 'u8[512]{0}', space=vmem, size = 0x400, scoped, tag = 'output window, operand 2, single buffered']
    %13 = vsyncpa [#allocation5], 0
    %14 = vsyncpa [#allocation6], 0
    %15 = vsyncpa [#allocation9], 0
    // Predicated region
    $region2: #{tpu_custom_call.1} parent=1 // pred_check
      _
    $region3: #{tpu_custom_call.1} parent=1 // pred_check_branch
      %17 = sbr.rel (0) target = $region5
    $region4: #{tpu_custom_call.1} parent=1 // pred_region
      _
    $region5: #{tpu_custom_call.1} parent=1 // pred_fallthru
      _
    // Predicated region
    $region6: #{tpu_custom_call.1} parent=1 // pred_check
      _
    $region7: #{tpu_custom_call.1} parent=1 // pred_check_branch
      %19 = sbr.rel (0) target = $region9
    $region8: #{tpu_custom_call.1} parent=1 // pred_region
      _
    $region9: #{tpu_custom_call.1} parent=1 // pred_fallthru
      _
    // Predicated region
    $region10: #{tpu_custom_call.1} parent=1 // pred_check
      _
    $region11: #{tpu_custom_call.1} parent=1 // pred_check_branch
      %21 = sbr.rel (0) target = $region13
    $region12: #{tpu_custom_call.1} parent=1 // pred_region
      %s23 = ssub.s32 2048, 2048
      %24 = vsyncadd [#allocation5], %s23
      %s25 = sshll.u32 [#allocation4], 4
      %s26 = int_to_ptr.vmem [resolvable:$true] %s25
      %31 = dma.hbm_to_vmem [thread:$0]  %s2, 2048, %s26, [#allocation5], 128, 128, 8
    $region13: #{tpu_custom_call.1} parent=1 // pred_fallthru
      _
    // Predicated region
    $region14: #{tpu_custom_call.1} parent=1 // pred_check
      _
    $region15: #{tpu_custom_call.1} parent=1 // pred_check_branch
      %33 = sbr.rel (0) target = $region17
    $region16: #{tpu_custom_call.1} parent=1 // pred_region
      _
    $region17: #{tpu_custom_call.1} parent=1 // pred_fallthru
      _
    // Predicated region
    $region18: #{tpu_custom_call.1} parent=1 // pred_check
      _
    $region19: #{tpu_custom_call.1} parent=1 // pred_check_branch
      %35 = sbr.rel (0) target = $region21
    $region20: #{tpu_custom_call.1} parent=1 // pred_region
      _
    $region21: #{tpu_custom_call.1} parent=1 // pred_fallthru
      _
    // Predicated region
    $region22: #{tpu_custom_call.1} parent=1 // pred_check
      _
    $region23: #{tpu_custom_call.1} parent=1 // pred_check_branch
      %37 = sbr.rel (0) target = $region25
    $region24: #{tpu_custom_call.1} parent=1 // pred_region
      %38 = dma.done [#allocation5], 2048
    $region25: #{tpu_custom_call.1} parent=1 // pred_fallthru
      _
    %p39 = scmp.eq.s32.totalorder 0, 0
    // Predicated region
    $region26: #{tpu_custom_call.1} parent=1 // pred_check
      %p40 = pneg %p39
    $region27: #{tpu_custom_call.1} parent=1 // pred_check_branch
      %42 = sbr.rel (%p40) target = $region29
    $region28: #{tpu_custom_call.1} parent=1 // pred_region
      %43 = vst [vmem:[#allocation2] sm:$0x1] 0.0
      %44 = vst [vmem:[#allocation3] sm:$0x1] 0.0
    $region29: #{tpu_custom_call.1} parent=1 // pred_fallthru
      _
    %v45 = vlaneseq
    %v46 = vand.u32 %v45, 127
    %v47 = vld [vmem:[%s0] sm:$0xff]
    %48 = vset.pattern.permute.xlu0 0
    %49 = vperm.xlu0 %48, %v47
    %v50 = vpop.permute.xlu0 %49
    %vm51 = vcmp.eq.s32.totalorder %v46, %v50
    %v52 = vsel %vm51, 1, 0
    %v53 = vcvt.s32.f32 %v52
    %54 = vset.pattern.permute.xlu0 1
    %55 = vperm.xlu0 %54, %v47
    %v56 = vpop.permute.xlu0 %55
    %vm57 = vcmp.eq.s32.totalorder %v46, %v56
    %v58 = vsel %vm57, 1, 0
    %v59 = vcvt.s32.f32 %v58
    %v60 = vadd.f32 %v53, %v59
    %v61 = vld [vmem:[#allocation4] sm:$0xff]
    %v62 = vld [vmem:[#allocation4 + $0x8] sm:$0xff]
    %v63 = vld [vmem:[#allocation4 + $0x10] sm:$0xff]
    %v64 = vld [vmem:[#allocation4 + $0x18] sm:$0xff]
    %v65 = vld [vmem:[#allocation4 + $0x20] sm:$0xff]
    %v66 = vld [vmem:[#allocation4 + $0x28] sm:$0xff]
    %v67 = vld [vmem:[#allocation4 + $0x30] sm:$0xff]
    %v68 = vld [vmem:[#allocation4 + $0x38] sm:$0xff]
    %v69 = vld [vmem:[#allocation4 + $0x40] sm:$0xff]
    %v70 = vld [vmem:[#allocation4 + $0x48] sm:$0xff]
    %v71 = vld [vmem:[#allocation4 + $0x50] sm:$0xff]
    %v72 = vld [vmem:[#allocation4 + $0x58] sm:$0xff]
    %v73 = vld [vmem:[#allocation4 + $0x60] sm:$0xff]
    %v74 = vld [vmem:[#allocation4 + $0x68] sm:$0xff]
    %v75 = vld [vmem:[#allocation4 + $0x70] sm:$0xff]
    %v76 = vld [vmem:[#allocation4 + $0x78] sm:$0xff]
    %77 = vmatprep.subr.mxu0 0.0
    %78 = vmatpush1.msra.mxu0 %v61
    %79 = vmatprep.subr.mxu0 0.0
    %80 = vmatpush1.msra.mxu0 %v62
    %81 = vmatprep.subr.mxu0 0.0
    %82 = vmatpush1.msra.mxu0 %v63
    %83 = vmatprep.subr.mxu0 0.0
    %84 = vmatpush1.msra.mxu0 %v64
    %85 = vmatprep.subr.mxu0 0.0
    %86 = vmatpush1.msra.mxu0 %v65
    %87 = vmatprep.subr.mxu0 0.0
    %88 = vmatpush1.msra.mxu0 %v66
    %89 = vmatprep.subr.mxu0 0.0
    %90 = vmatpush1.msra.mxu0 %v67
    %91 = vmatprep.subr.mxu0 0.0
    %92 = vmatpush1.msra.mxu0 %v68
    %93 = vmatprep.subr.mxu0 0.0
    %94 = vmatpush1.msra.mxu0 %v69
    %95 = vmatprep.subr.mxu0 0.0
    %96 = vmatpush1.msra.mxu0 %v70
    %97 = vmatprep.subr.mxu0 0.0
    %98 = vmatpush1.msra.mxu0 %v71
    %99 = vmatprep.subr.mxu0 0.0
    %100 = vmatpush1.msra.mxu0 %v72
    %101 = vmatprep.subr.mxu0 0.0
    %102 = vmatpush1.msra.mxu0 %v73
    %103 = vmatprep.subr.mxu0 0.0
    %104 = vmatpush1.msra.mxu0 %v74
    %105 = vmatprep.subr.mxu0 0.0
    %106 = vmatpush1.msra.mxu0 %v75
    %107 = vmatprep.subr.mxu0 0.0
    %108 = vmatpush1.msra.mxu0 %v76
    %109 = vmatprep.subr.mxu0 0.0
    %110 = vmatpush1.msra.mxu0 0.0
    %111 = vmatprep.subr.mxu0 0.0
    %112 = vmatpush1.msra.mxu0 0.0
    %113 = vmatprep.subr.mxu0 0.0
    %114 = vmatpush1.msra.mxu0 0.0
    %115 = vmatprep.subr.mxu0 0.0
    %116 = vmatpush1.msra.mxu0 0.0
    %117 = vmatprep.subr.mxu0 0.0
    %118 = vmatpush1.msra.mxu0 0.0
    %119 = vmatprep.subr.mxu0 0.0
    %120 = vmatpush1.msra.mxu0 0.0
    %121 = vmatprep.subr.mxu0 0.0
    %122 = vmatpush1.msra.mxu0 0.0
    %123 = vmatprep.subr.mxu0 0.0
    %124 = vmatpush1.msra.mxu0 0.0
    %125 = vmatprep.subr.mxu0 0.0
    %126 = vmatpush1.msra.mxu0 0.0
    %127 = vmatprep.subr.mxu0 0.0
    %128 = vmatpush1.msra.mxu0 0.0
    %129 = vmatprep.subr.mxu0 0.0
    %130 = vmatpush1.msra.mxu0 0.0
    %131 = vmatprep.subr.mxu0 0.0
    %132 = vmatpush1.msra.mxu0 0.0
    %133 = vmatprep.subr.mxu0 0.0
    %134 = vmatpush1.msra.mxu0 0.0
    %135 = vmatprep.subr.mxu0 0.0
    %136 = vmatpush1.msra.mxu0 0.0
    %137 = vmatprep.subr.mxu0 0.0
    %138 = vmatpush1.msra.mxu0 0.0
    %139 = vmatprep.subr.mxu0 0.0
    %140 = vmatpush1.msra.mxu0 0.0
    %141 = vmatprep.mubr.f32.mxu0 0.0
    %142 = vmatmul.mubr.f32.gmra.mrb[0].mxu0 %v60
    %v143 = vpop.f32.mrb[0].mxu0
    %v144 = vadd.f32 0.0, %v143
    %v145 = vpop.f32.mrb[0].mxu0
    %146 = vdwg.mxu0
    %147 = vst [vmem:[#allocation7] sm:$0xff] %v144
    %v148 = vld [vmem:[#allocation7] sm:$0xff]
    %v149 = vld [vmem:[%s1] sm:$0xff]
    %v150 = vadd.f32 %v148, %v149
    %151 = vst [vmem:[#allocation7] sm:$0xff] %v150
    %v152 = vld [vmem:[#allocation7] sm:$0xff]
    %s153 = smul.u32 0, 8
    %v154 = vlaneseq
    %v155 = vshrl.u32 %v154, 7
    %v156 = vstv %s153
    %v157 = vadd.s32 %v156, %v155
    %vm158 = vcmp.lt.s32.totalorder %v157, 8
    %v159 = vsel %vm158, 1, 0
    %v160 = vcvt.s32.f32 %v159
    %v161 = vmul.f32 %v152, %v160
    %v162 = vld [vmem:[#allocation2] sm:$0x1]
    %v163 = vrot.slane %v161, 4
    %v164 = vadd.f32 %v161, %v163
    %v165 = vrot.slane %v164, 2
    %v166 = vadd.f32 %v164, %v165
    %v167 = vrot.slane %v166, 1
    %v168 = vadd.f32 %v166, %v167
    %v169 = vadd.f32 %v162, %v168
    %170 = vst [vmem:[#allocation2] sm:$0x1] %v169
    %v171 = vld [vmem:[#allocation3] sm:$0x1]
    %v172 = vmul.f32 %v161, %v161
    %v173 = vrot.slane %v172, 4
    %v174 = vadd.f32 %v172, %v173
    %v175 = vrot.slane %v174, 2
    %v176 = vadd.f32 %v174, %v175
    %v177 = vrot.slane %v176, 1
    %v178 = vadd.f32 %v176, %v177
    %v179 = vadd.f32 %v171, %v178
    %180 = vst [vmem:[#allocation3] sm:$0x1] %v179
    // Predicated region
    $region30: #{tpu_custom_call.1} parent=1 // pred_check
      %p181 = pneg %p39
    $region31: #{tpu_custom_call.1} parent=1 // pred_check_branch
      %183 = sbr.rel (%p181) target = $region33
    $region32: #{tpu_custom_call.1} parent=1 // pred_region
      %v184 = vld [vmem:[#allocation2] sm:$0x1]
      %v185 = vmul.f32 %v184, 0.125
      %v186 = vld [vmem:[#allocation3] sm:$0x1]
      %v187 = vmul.f32 %v186, 0.125
      %v188 = vmul.f32 %v185, %v185
      %v189 = vsub.f32 %v187, %v188
      %v190 = vmax.f32 %v189, 0.0
      %v191 = vld [vmem:[%s3] sm:$0x1]
      %v192 = vadd.f32 %v190, 1e-05
      %v193 = vrsqrt.pop %v192
      %v194 = vmul.f32 %v191, %v193
      %195 = vst [vmem:[#allocation8] sm:$0x1] %v194
      %v196 = vld [vmem:[%s4] sm:$0x1]
      %v197 = vmul.f32 %v185, %v194
      %v198 = vsub.f32 %v196, %v197
      %199 = vst [vmem:[#allocation10] sm:$0x1] %v198
    $region33: #{tpu_custom_call.1} parent=1 // pred_fallthru
      _
    // Predicated region
    $region34: #{tpu_custom_call.1} parent=1 // pred_check
      _
    $region35: #{tpu_custom_call.1} parent=1 // pred_check_branch
      %201 = sbr.rel (0) target = $region37
    $region36: #{tpu_custom_call.1} parent=1 // pred_region
      %s203 = ssub.s32 128, 128
      %204 = vsyncadd [#allocation6], %s203
      %s206 = sshll.u32 [#allocation7], 4
      %s207 = int_to_ptr.vmem [resolvable:$true] %s206
      %209 = dma.vmem_to_hbm [thread:$0]  %s207, 128, %s5, [#allocation6]
    $region37: #{tpu_custom_call.1} parent=1 // pred_fallthru
      _
    // Predicated region
    $region38: #{tpu_custom_call.1} parent=1 // pred_check
      _
    $region39: #{tpu_custom_call.1} parent=1 // pred_check_branch
      %211 = sbr.rel (0) target = $region41
    $region40: #{tpu_custom_call.1} parent=1 // pred_region
      %s213 = ssub.s32 16, 16
      %214 = vsyncadd [#allocation9], %s213
      %s216 = sshll.u32 [#allocation8], 4
      %s217 = int_to_ptr.vmem [resolvable:$true] %s216
      %219 = dma.vmem_to_hbm [thread:$0]  %s217, 16, %s6, [#allocation9]
    $region41: #{tpu_custom_call.1} parent=1 // pred_fallthru
      _
    // Predicated region
    $region42: #{tpu_custom_call.1} parent=1 // pred_check
      _
    $region43: #{tpu_custom_call.1} parent=1 // pred_check_branch
      %221 = sbr.rel (0) target = $region45
    $region44: #{tpu_custom_call.1} parent=1 // pred_region
      %s223 = ssub.s32 16, 16
      %224 = vsyncadd [#allocation9], %s223
      %s226 = sshll.u32 [#allocation10], 4
      %s227 = int_to_ptr.vmem [resolvable:$true] %s226
      %229 = dma.vmem_to_hbm [thread:$0]  %s227, 16, %s7, [#allocation9]
    $region45: #{tpu_custom_call.1} parent=1 // pred_fallthru
      _
    // Predicated region
    $region46: #{tpu_custom_call.1} parent=1 // pred_check
      _
    $region47: #{tpu_custom_call.1} parent=1 // pred_check_branch
      %231 = sbr.rel (0) target = $region49
    $region48: #{tpu_custom_call.1} parent=1 // pred_region
      %232 = dma.done [#allocation6], 128
    $region49: #{tpu_custom_call.1} parent=1 // pred_fallthru
      _
    // Predicated region
    $region50: #{tpu_custom_call.1} parent=1 // pred_check
      _
    $region51: #{tpu_custom_call.1} parent=1 // pred_check_branch
      %234 = sbr.rel (0) target = $region53
    $region52: #{tpu_custom_call.1} parent=1 // pred_region
      %235 = dma.done [#allocation9], 16
    $region53: #{tpu_custom_call.1} parent=1 // pred_fallthru
      _
    // Predicated region
    $region54: #{tpu_custom_call.1} parent=1 // pred_check
      _
    $region55: #{tpu_custom_call.1} parent=1 // pred_check_branch
      %237 = sbr.rel (0) target = $region57
    $region56: #{tpu_custom_call.1} parent=1 // pred_region
      %238 = dma.done [#allocation9], 16
    $region57: #{tpu_custom_call.1} parent=1 // pred_fallthru
      _
    %239 = vsyncpa [#allocation5], 1
    %240 = vsyncpa [#allocation6], 1
    %241 = vsyncpa [#allocation9], 1

</llo_original>
